<compile_context>
chip_gen: v7x
topology: tpu7x:2x2x1
jax: 0.10.0
libtpu: 0.0.40
codegen_flags: <defaults>
</compile_context>

<pallas_src>
import functools

import jax
import jax.numpy as jnp
from jax.experimental import pallas as pl
from jax.experimental.pallas import tpu as pltpu


def _adjoined_loss_kernel(out_ref, tgt_ref, part_ref, *, b_total):
    # out_ref: (2, TB, C)   [0] = first-half logits, [1] = second-half logits
    # tgt_ref: (TB, C) soft targets
    # part_ref: (1, 8, 128) per-tile partial sums (ce @ [0,0,0], kl @ [0,1,0])
    o1 = out_ref[0].astype(jnp.float32)                       # (TB, C)
    t = tgt_ref[...].astype(jnp.float32)                      # (TB, C)
    tb = o1.shape[0]

    # ---- first half: stable log-softmax + soft-target CE -------------------
    # (CE computed immediately so t / z1 / logp1 die before the o2 path.)
    m1 = jnp.max(o1, axis=-1, keepdims=True)
    z1 = o1 - m1
    e1 = jnp.exp(z1)
    s1 = jnp.sum(e1, axis=-1, keepdims=True)                  # (TB, 1)
    logp1 = z1 - jnp.log(s1)
    ce = jnp.sum(-t * logp1, axis=-1, keepdims=True)          # (TB, 1)
    p1 = e1 * pl.reciprocal(s1)                               # 1 recip / row

    # ---- second half: softmax ----------------------------------------------
    o2 = out_ref[1].astype(jnp.float32)                       # (TB, C)
    m2 = jnp.max(o2, axis=-1, keepdims=True)
    e2 = jnp.exp(o2 - m2)
    s2 = jnp.sum(e2, axis=-1, keepdims=True)
    p2 = e2 * pl.reciprocal(s2)

    # ---- KL-style term ------------------------------------------------------
    # Exact rewrite: 1e-6 + p1/(p2+1e-6) = (p1 + 1e-6*(p2+1e-6)) / (p2+1e-6),
    # so the log splits into two EUP logs and no (TB,C) reciprocal is needed.
    d = p2 + 1e-6
    kl = jnp.sum(p1 * (jnp.log(p1 + 1e-6 * d) - jnp.log(d)),
                 axis=-1, keepdims=True)                      # (TB, 1)

    # Mask padded rows of a ragged last tile (static no-op when TB | B).
    # Padded rows may contain garbage (NaN/Inf after exp/log); the select
    # discards them, so the reduction stays correct.
    if b_total % tb != 0:
        rows = pl.program_id(0) * tb + jax.lax.broadcasted_iota(
            jnp.int32, (tb, 1), 0)
        valid = rows < b_total
        ce = jnp.where(valid, ce, 0.0)
        kl = jnp.where(valid, kl, 0.0)

    ce_part = jnp.sum(ce)                                     # scalar partials
    kl_part = jnp.sum(kl)

    # One lane-dense (1, 8, 128) output block per tile: ce at (sublane 0,
    # lane 0), kl at (sublane 1, lane 0), zeros elsewhere.  The wrapper then
    # reduces with a plain sum over (tile, lane) axes — no strided gather.
    row = jax.lax.broadcasted_iota(jnp.int32, (8, 128), 0)
    lane = jax.lax.broadcasted_iota(jnp.int32, (8, 128), 1)
    vals = jnp.where((row == 0) & (lane == 0), ce_part,
                     jnp.where((row == 1) & (lane == 0), kl_part, 0.0))
    part_ref[...] = vals[None]


def _vmem_limit_bytes():
    """Generation-aware scoped-VMEM limit: ~3/4 of physical, capped at 96 MiB.
    v5e/v6e (128 MiB physical) -> 96 MiB; v7x (64 MiB per TC) -> 48 MiB."""
    cap = None
    try:
        cap = getattr(pltpu.get_tpu_info(), "vmem_capacity_bytes", None)
    except Exception:
        cap = None
    if not cap:
        cap = 64 * 1024 * 1024            # conservative fallback (v7x per-core)
    return min((cap * 3) // 4, 96 * 1024 * 1024)


def _pick_tile_rows(b, c, itemsize, vmem_limit):
    """Largest batch tile whose full per-step working set fits in VMEM.

    Working set per row of the tile:
      * double-buffered inputs: 2 x (2*C logits + C targets) x itemsize
      * ~10 live (TB, C) f32 intermediates in the kernel body
    Budget is 60% of the scoped limit (headroom for outputs/compiler scratch).
    """
    per_row = 2 * 3 * c * itemsize + 10 * c * 4
    budget = int(0.6 * vmem_limit)
    min_rows = 16 if itemsize < 4 else 8          # bf16 packs (16,128) sublanes
    if min(b, min_rows) * per_row > budget:
        # TODO(synk): tile the class dim (two-pass / online-softmax) for
        # vocab-scale C; today the full class dim must be resident per row.
        raise ValueError(
            f"class dim C={c} too large for the single-pass kernel "
            f"(needs ~{min(b, min_rows) * per_row} B of VMEM per step, "
            f"scoped limit {vmem_limit} B)")
    tb = budget // per_row
    if tb >= b:
        return b                                   # block == full dim is legal
    tb = max(min_rows, (tb // min_rows) * min_rows)
    return min(tb, b)


def adjoined_loss(output, target, alpha=1.0, tile_rows=None, core_parallel=False):
    """output: [2B, C] logits, target: [B, C] soft labels. Returns scalar loss.

    core_parallel=True marks the batch-tile grid axis CORE_PARALLEL so both
    TensorCores of a multi-core chip (v7x) pull tiles concurrently.
    """
    l, c = output.shape
    if l % 2 != 0:
        raise ValueError("output.shape[0] must be even (two stacked halves)")
    b = l // 2
    assert target.shape == (b, c), (target.shape, (b, c))

    itemsize = jnp.dtype(output.dtype).itemsize
    vmem_limit = _vmem_limit_bytes()
    min_rows = 16 if itemsize < 4 else 8

    if tile_rows is not None:
        tb = min(int(tile_rows), b)
        if tb < b:                                  # enforce (8,128) legality
            tb = max(min_rows, (tb // min_rows) * min_rows)
            tb = min(tb, b)
    else:
        tb = _pick_tile_rows(b, c, itemsize, vmem_limit)
    num_tiles = (b + tb - 1) // tb

    # [2B, C] -> [2, B, C]: bitcast view; each logit byte read from HBM once.
    out3 = output.reshape(2, b, c)

    kernel = functools.partial(_adjoined_loss_kernel, b_total=b)
    semantics = (pltpu.CORE_PARALLEL if core_parallel else "parallel",)

    parts = pl.pallas_call(
        kernel,
        out_shape=jax.ShapeDtypeStruct((num_tiles, 8, 128), jnp.float32),
        grid=(num_tiles,),
        in_specs=[
            pl.BlockSpec((2, tb, c), lambda i: (0, i, 0)),
            pl.BlockSpec((tb, c), lambda i: (i, 0)),
        ],
        out_specs=pl.BlockSpec((1, 8, 128), lambda i: (i, 0, 0)),
        compiler_params=pltpu.CompilerParams(
            dimension_semantics=semantics,
            vmem_limit_bytes=vmem_limit,
        ),
    )(out3, target)

    # Tiny final reduce in the wrapper: whole-lane sum, no strided gather.
    sums = jnp.sum(parts, axis=(0, 2))              # (8,): [ce, kl, 0, ...]
    ce_mean = sums[0] / b
    kl_mean = sums[1] / b
    return ce_mean + float(alpha) * 10.0 * kl_mean


def adjoined_loss_ref(output, target, alpha=1.0):
    """Pure-JAX reference of the PyTorch training path (f32 math)."""
    output = output.astype(jnp.float32)
    target = target.astype(jnp.float32)
    b = output.shape[0] // 2
    o1, o2 = output[:b], output[b:]
    logp1 = jax.nn.log_softmax(o1, axis=-1)
    loss = jnp.mean(jnp.sum(-target * logp1, axis=-1))
    p1 = jax.nn.softmax(o1, axis=-1)
    p2 = jax.nn.softmax(o2, axis=-1)
    kl = jnp.sum(p1 * jnp.log(1e-6 + p1 / (p2 + 1e-6)), axis=-1)
    return loss + alpha * 10.0 * jnp.mean(kl)


if __name__ == "__main__":
    key = jax.random.PRNGKey(0)
    k1, k2, k3, k4, k5, k6 = jax.random.split(key, 6)

    # --- small shape consistent with the module's classification head -------
    B, C = 4, 8
    output = jax.random.normal(k1, (2 * B, C), dtype=jnp.float32)
    target = jax.nn.softmax(
        jax.random.normal(k2, (B, C), dtype=jnp.float32), axis=-1)

    got = adjoined_loss(output, target, alpha=1.0)
    jax.block_until_ready(got)
    want = adjoined_loss_ref(output, target, alpha=1.0)
    assert jnp.allclose(got, want, rtol=1e-5, atol=1e-5), (got, want)

    # --- tiled + masked path (3 grid steps, ragged last tile) ---------------
    B2, C2 = 20, 128
    output2 = jax.random.normal(k3, (2 * B2, C2), dtype=jnp.float32)
    target2 = jax.nn.softmax(
        jax.random.normal(k4, (B2, C2), dtype=jnp.float32), axis=-1)
    got2 = adjoined_loss(output2, target2, alpha=0.5, tile_rows=8)
    jax.block_until_ready(got2)
    want2 = adjoined_loss_ref(output2, target2, alpha=0.5)
    assert jnp.allclose(got2, want2, rtol=1e-5, atol=1e-5), (got2, want2)

    # --- bf16 inputs (half the HBM bytes), 16-row tiles ----------------------
    B3, C3 = 48, 256
    output3 = jax.random.normal(k5, (2 * B3, C3), dtype=jnp.float32).astype(
        jnp.bfloat16)
    target3 = jax.nn.softmax(
        jax.random.normal(k6, (B3, C3), dtype=jnp.float32), axis=-1).astype(
        jnp.bfloat16)
    got3 = adjoined_loss(output3, target3, alpha=1.0, tile_rows=16)
    jax.block_until_ready(got3)
    want3 = adjoined_loss_ref(output3, target3, alpha=1.0)
    assert jnp.allclose(got3, want3, rtol=1e-4, atol=1e-4), (got3, want3)

    # TODO(synk): eval path (training=False: F.nll_loss with integer targets
    # and the (loss, kl_mean, total) tuple return) not implemented; the module
    # defaults to training=True which is what the kernel reproduces.
    print("KERNEL_OK")
</pallas_src>

<mosaic_0001>
module attributes {stable_mosaic.version = 11 : i64} {
  func.func @_adjoined_loss_kernel(%arg0: i32, %arg1: memref<2x4x8xf32, #tpu.memory_space<vmem>>, %arg2: memref<4x8xf32, #tpu.memory_space<vmem>>, %arg3: memref<1x8x128xf32, #tpu.memory_space<vmem>>) attributes {dimension_semantics = [#tpu.dimension_semantics<parallel>], iteration_bounds = array<i64: 1>, scalar_prefetch = 0 : i64, scratch_operands = 0 : i64, tpu.core_type = #tpu.core_type<tc>, window_params = [{transform_indices = @transform_0, window_bounds = array<i64: 2, 4, 8>}, {transform_indices = @transform_1, window_bounds = array<i64: 4, 8>}, {transform_indices = @transform_2, window_bounds = array<i64: 1, 8, 128>}]} {
    %c0 = arith.constant 0 : index
    %c0_0 = arith.constant 0 : index
    %c0_1 = arith.constant 0 : index
    %0 = vector.load %arg1[%c0, %c0_0, %c0_1] : memref<2x4x8xf32, #tpu.memory_space<vmem>>, vector<1x4x8xf32>
    %1 = vector.shape_cast %0 : vector<1x4x8xf32> to vector<4x8xf32>
    %c0_2 = arith.constant 0 : index
    %c0_3 = arith.constant 0 : index
    %2 = vector.load %arg2[%c0_2, %c0_3] : memref<4x8xf32, #tpu.memory_space<vmem>>, vector<4x8xf32>
    %cst = arith.constant dense<0xFF800000> : vector<4xf32>
    %3 = vector.multi_reduction <maximumf>, %1, %cst [1] : vector<4x8xf32> to vector<4xf32>
    %4 = vector.shape_cast %3 : vector<4xf32> to vector<4x1xf32>
    %5 = vector.broadcast %4 : vector<4x1xf32> to vector<4x8xf32>
    %6 = arith.subf %1, %5 : vector<4x8xf32>
    %7 = math.exp %6 : vector<4x8xf32>
    %cst_4 = arith.constant dense<0.000000e+00> : vector<4xf32>
    %8 = vector.multi_reduction <add>, %7, %cst_4 [1] : vector<4x8xf32> to vector<4xf32>
    %9 = vector.shape_cast %8 : vector<4xf32> to vector<4x1xf32>
    %10 = math.log %9 : vector<4x1xf32>
    %11 = vector.broadcast %10 : vector<4x1xf32> to vector<4x8xf32>
    %12 = arith.subf %6, %11 : vector<4x8xf32>
    %cst_5 = arith.constant 0.000000e+00 : f32
    %13 = vector.broadcast %cst_5 : f32 to vector<4x8xf32>
    %14 = arith.subf %13, %2 : vector<4x8xf32>
    %15 = arith.mulf %14, %12 : vector<4x8xf32>
    %cst_6 = arith.constant dense<0.000000e+00> : vector<4xf32>
    %16 = vector.multi_reduction <add>, %15, %cst_6 [1] : vector<4x8xf32> to vector<4xf32>
    %17 = vector.shape_cast %16 : vector<4xf32> to vector<4x1xf32>
    %18 = tpu.reciprocal %9 : vector<4x1xf32> -> vector<4x1xf32>
    %19 = vector.broadcast %18 : vector<4x1xf32> to vector<4x8xf32>
    %20 = arith.mulf %7, %19 : vector<4x8xf32>
    %c1 = arith.constant 1 : index
    %c0_7 = arith.constant 0 : index
    %c0_8 = arith.constant 0 : index
    %21 = vector.load %arg1[%c1, %c0_7, %c0_8] : memref<2x4x8xf32, #tpu.memory_space<vmem>>, vector<1x4x8xf32>
    %22 = vector.shape_cast %21 : vector<1x4x8xf32> to vector<4x8xf32>
    %cst_9 = arith.constant dense<0xFF800000> : vector<4xf32>
    %23 = vector.multi_reduction <maximumf>, %22, %cst_9 [1] : vector<4x8xf32> to vector<4xf32>
    %24 = vector.shape_cast %23 : vector<4xf32> to vector<4x1xf32>
    %25 = vector.broadcast %24 : vector<4x1xf32> to vector<4x8xf32>
    %26 = arith.subf %22, %25 : vector<4x8xf32>
    %27 = math.exp %26 : vector<4x8xf32>
    %cst_10 = arith.constant dense<0.000000e+00> : vector<4xf32>
    %28 = vector.multi_reduction <add>, %27, %cst_10 [1] : vector<4x8xf32> to vector<4xf32>
    %29 = vector.shape_cast %28 : vector<4xf32> to vector<4x1xf32>
    %30 = tpu.reciprocal %29 : vector<4x1xf32> -> vector<4x1xf32>
    %31 = vector.broadcast %30 : vector<4x1xf32> to vector<4x8xf32>
    %32 = arith.mulf %27, %31 : vector<4x8xf32>
    %cst_11 = arith.constant 9.99999997E-7 : f32
    %33 = vector.broadcast %cst_11 : f32 to vector<4x8xf32>
    %34 = arith.addf %32, %33 : vector<4x8xf32>
    %cst_12 = arith.constant 9.99999997E-7 : f32
    %35 = vector.broadcast %cst_12 : f32 to vector<4x8xf32>
    %36 = arith.mulf %35, %34 : vector<4x8xf32>
    %37 = arith.addf %20, %36 : vector<4x8xf32>
    %38 = math.log %37 : vector<4x8xf32>
    %39 = math.log %34 : vector<4x8xf32>
    %40 = arith.subf %38, %39 : vector<4x8xf32>
    %41 = arith.mulf %20, %40 : vector<4x8xf32>
    %cst_13 = arith.constant dense<0.000000e+00> : vector<4xf32>
    %42 = vector.multi_reduction <add>, %41, %cst_13 [1] : vector<4x8xf32> to vector<4xf32>
    %43 = vector.shape_cast %42 : vector<4xf32> to vector<4x1xf32>
    %44 = vector.shape_cast %17 : vector<4x1xf32> to vector<1x4x1xf32>
    %cst_14 = arith.constant dense<0.000000e+00> : vector<1xf32>
    %45 = vector.multi_reduction <add>, %44, %cst_14 [1, 2] : vector<1x4x1xf32> to vector<1xf32>
    %46 = vector.shape_cast %45 : vector<1xf32> to vector<1x1x1xf32>
    %47 = vector.extract %46[0, 0, 0] : f32 from vector<1x1x1xf32>
    %48 = vector.shape_cast %43 : vector<4x1xf32> to vector<1x4x1xf32>
    %cst_15 = arith.constant dense<0.000000e+00> : vector<1xf32>
    %49 = vector.multi_reduction <add>, %48, %cst_15 [1, 2] : vector<1x4x1xf32> to vector<1xf32>
    %50 = vector.shape_cast %49 : vector<1xf32> to vector<1x1x1xf32>
    %51 = vector.extract %50[0, 0, 0] : f32 from vector<1x1x1xf32>
    %52 = tpu.iota {dimensions = array<i32: 0>} : vector<8x128xi32>
    %53 = tpu.iota {dimensions = array<i32: 1>} : vector<8x128xi32>
    %c0_i32 = arith.constant 0 : i32
    %54 = vector.broadcast %c0_i32 : i32 to vector<8x128xi32>
    %55 = arith.cmpi eq, %52, %54 : vector<8x128xi32>
    %c0_i32_16 = arith.constant 0 : i32
    %56 = vector.broadcast %c0_i32_16 : i32 to vector<8x128xi32>
    %57 = arith.cmpi eq, %53, %56 : vector<8x128xi32>
    %58 = arith.andi %55, %57 : vector<8x128xi1>
    %c1_i32 = arith.constant 1 : i32
    %59 = vector.broadcast %c1_i32 : i32 to vector<8x128xi32>
    %60 = arith.cmpi eq, %52, %59 : vector<8x128xi32>
    %c0_i32_17 = arith.constant 0 : i32
    %61 = vector.broadcast %c0_i32_17 : i32 to vector<8x128xi32>
    %62 = arith.cmpi eq, %53, %61 : vector<8x128xi32>
    %63 = arith.andi %60, %62 : vector<8x128xi1>
    %cst_18 = arith.constant 0.000000e+00 : f32
    %64 = vector.broadcast %51 : f32 to vector<8x128xf32>
    %65 = vector.broadcast %cst_18 : f32 to vector<8x128xf32>
    %66 = arith.select %63, %64, %65 : vector<8x128xi1>, vector<8x128xf32>
    %67 = vector.broadcast %47 : f32 to vector<8x128xf32>
    %68 = arith.select %58, %67, %66 : vector<8x128xi1>, vector<8x128xf32>
    %69 = vector.shape_cast %68 : vector<8x128xf32> to vector<1x8x128xf32>
    %c0_19 = arith.constant 0 : index
    %c0_20 = arith.constant 0 : index
    %c0_21 = arith.constant 0 : index
    %70 = vector.load %arg3[%c0_19, %c0_20, %c0_21] : memref<1x8x128xf32, #tpu.memory_space<vmem>>, vector<1x8x128xf32>
    tpu.vector_store %arg3[%c0_19, %c0_20, %c0_21], %69 {strides = array<i32>} : memref<1x8x128xf32, #tpu.memory_space<vmem>>, vector<1x8x128xf32>,
    return
  }
  func.func @transform_0(%arg0: i32) -> (i32, i32, i32) {
    %c0_i32 = arith.constant 0 : i32
    %c0_i32_0 = arith.constant 0 : i32
    %c0_i32_1 = arith.constant 0 : i32
    return %c0_i32, %arg0, %c0_i32_0 : i32, i32, i32
  }
  func.func @transform_1(%arg0: i32) -> (i32, i32) {
    %c0_i32 = arith.constant 0 : i32
    %c0_i32_0 = arith.constant 0 : i32
    return %arg0, %c0_i32 : i32, i32
  }
  func.func @transform_2(%arg0: i32) -> (i32, i32, i32) {
    %c0_i32 = arith.constant 0 : i32
    %c0_i32_0 = arith.constant 0 : i32
    %c0_i32_1 = arith.constant 0 : i32
    return %arg0, %c0_i32, %c0_i32_0 : i32, i32, i32
  }
}

</mosaic_0001>

<llo_original>
// kernel: tpu_custom_call.1
$region0: #{tpu_custom_call.1}
  #allocation0 [shape = 'u32[]', space=smem, size = 0x4, offset = 0x4, fixed_abs, tag = 'smem constant byte address 0x4 - core index']
  #allocation1 [shape = 'u32[144,128]{1,0:T(1,128)}', space=vmem, size = 0x12000, scoped, tag = 'internal scratch']
  %s0 = inlined_call_operand.hbm [shape: f32[2,4,8], index: 0, kind: input, shape index: {}]
  %s1 = inlined_call_operand.hbm [shape: f32[4,8], index: 1, kind: input, shape index: {}]
  %s2 = inlined_call_operand.hbm [shape: f32[1,8,128], index: 2, kind: output, shape index: {}]
  %s3 = sld [smem:[#allocation0]]
  $region26: #{tpu_custom_call.1} parent=0
    _
  %s5 = ssub.s32 1, %s3
  %s6 = scalar_select 0, %s5, %s3
  $region1: #{tpu_custom_call.1} parent=0
    #allocation2 [shape = 'u8[4096]{0}', space=vmem, size = 0x1000, scoped, tag = 'input window, operand 0, single buffered']
    #allocation3 [shape = 's32[1]{0}', space=sflag, size = 0x4, scoped, tag = 'scoped memory for tpu_custom_call.1']
    #allocation4 [shape = 's32[1]{0}', space=sflag, size = 0x4, scoped, tag = 'scoped memory for tpu_custom_call.1']
    #allocation5 [shape = 'u8[2048]{0}', space=vmem, size = 0x800, scoped, tag = 'input window, operand 1, single buffered']
    #allocation6 [shape = 's32[1]{0}', space=sflag, size = 0x4, scoped, tag = 'scoped memory for tpu_custom_call.1']
    #allocation7 [shape = 'u8[4096]{0}', space=vmem, size = 0x1000, scoped, tag = 'output window, operand 0, single buffered']
    %7 = vsyncpa [#allocation3], 0
    %8 = vsyncpa [#allocation6], 0
    %9 = vsyncpa [#allocation4], 0
    // Predicated region
    $region2: #{tpu_custom_call.1} parent=1 // pred_check
      _
    $region3: #{tpu_custom_call.1} parent=1 // pred_check_branch
      %11 = sbr.rel (0) target = $region5
    $region4: #{tpu_custom_call.1} parent=1 // pred_region
      %s13 = ssub.s32 128, 128
      %14 = vsyncadd [#allocation3], %s13
      %s15 = sshll.u32 [#allocation2], 4
      %s16 = int_to_ptr.vmem [resolvable:$true] %s15
      %21 = dma.hbm_to_vmem [thread:$0]  %s0, 128, %s16, [#allocation3], 64, 64, 4
    $region5: #{tpu_custom_call.1} parent=1 // pred_fallthru
      _
    // Predicated region
    $region6: #{tpu_custom_call.1} parent=1 // pred_check
      _
    $region7: #{tpu_custom_call.1} parent=1 // pred_check_branch
      %23 = sbr.rel (0) target = $region9
    $region8: #{tpu_custom_call.1} parent=1 // pred_region
      %s25 = ssub.s32 64, 64
      %26 = vsyncadd [#allocation6], %s25
      %s28 = sshll.u32 [#allocation5], 4
      %s29 = int_to_ptr.vmem [resolvable:$true] %s28
      %31 = dma.hbm_to_vmem [thread:$0]  %s1, 64, %s29, [#allocation6]
    $region9: #{tpu_custom_call.1} parent=1 // pred_fallthru
      _
    // Predicated region
    $region10: #{tpu_custom_call.1} parent=1 // pred_check
      _
    $region11: #{tpu_custom_call.1} parent=1 // pred_check_branch
      %33 = sbr.rel (0) target = $region13
    $region12: #{tpu_custom_call.1} parent=1 // pred_region
      %34 = dma.done [#allocation3], 128
    $region13: #{tpu_custom_call.1} parent=1 // pred_fallthru
      _
    // Predicated region
    $region14: #{tpu_custom_call.1} parent=1 // pred_check
      _
    $region15: #{tpu_custom_call.1} parent=1 // pred_check_branch
      %36 = sbr.rel (0) target = $region17
    $region16: #{tpu_custom_call.1} parent=1 // pred_region
      %37 = dma.done [#allocation6], 64
    $region17: #{tpu_custom_call.1} parent=1 // pred_fallthru
      _
    %v38 = vld [vmem:[#allocation2] sm:$0xf]
    %v39 = vld [vmem:[#allocation5] sm:$0xf]
    %vm40 = vcmask 60416
    %v41 = vsel %vm40, %v38, -inf
    %42 = vmax.xlane.f32.xlu0 %v41
    %v43 = vpop.xlane.xlu0 %42
    %v44 = vsub.f32 %v38, %v43
    %v45 = vmul.f32 %v44, 1.442695
    %v46 = vpow.pop %v45
    %v47 = vsel %vm40, %v46, 0.0
    %48 = vadd.xlane.f32.xlu0 %v47
    %v49 = vpop.xlane.xlu0 %48
    %v50 = vlog2.pop %v49
    %v51 = vmul.f32 %v50, 0.6931472
    %v52 = vsub.f32 %v44, %v51
    %v53 = vsub.f32 0.0, %v39
    %v54 = vmul.f32 %v53, %v52
    %v55 = vsel %vm40, %v54, 0.0
    %56 = vadd.xlane.f32.xlu0 %v55
    %v57 = vpop.xlane.xlu0 %56
    %v58 = vrcp.pop %v49
    %v59 = vmul.f32 %v46, %v58
    %s60 = scalar_lea.vmem [#allocation2], 4
    %v61 = vld [vmem:[%s60] sm:$0xf]
    %v62 = vsel %vm40, %v61, -inf
    %63 = vmax.xlane.f32.xlu0 %v62
    %v64 = vpop.xlane.xlu0 %63
    %v65 = vsub.f32 %v61, %v64
    %v66 = vmul.f32 %v65, 1.442695
    %v67 = vpow.pop %v66
    %v68 = vsel %vm40, %v67, 0.0
    %69 = vadd.xlane.f32.xlu0 %v68
    %v70 = vpop.xlane.xlu0 %69
    %v71 = vrcp.pop %v70
    %v72 = vmul.f32 %v67, %v71
    %v73 = vadd.f32 %v72, 1e-06
    %v74 = vmul.f32 %v73, 1e-06
    %v75 = vadd.f32 %v59, %v74
    %v76 = vlog2.pop %v75
    %v77 = vmul.f32 %v76, 0.6931472
    %v78 = vlog2.pop %v73
    %v79 = vmul.f32 %v78, 0.6931472
    %v80 = vsub.f32 %v77, %v79
    %v81 = vmul.f32 %v59, %v80
    %v82 = vsel %vm40, %v81, 0.0
    %83 = vadd.xlane.f32.xlu0 %v82
    %v84 = vpop.xlane.xlu0 %83
    %vm85 = vcmask 3072
    %v86 = vsel %vm85, %v57, 0.0
    %87 = vadd.xlane.f32.xlu0 %v86
    %v88 = vpop.xlane.xlu0 %87
    %v89 = vrot.slane %v88, 4
    %v90 = vadd.f32 %v88, %v89
    %v91 = vrot.slane %v90, 2
    %v92 = vadd.f32 %v90, %v91
    %v93 = vrot.slane %v92, 1
    %v94 = vadd.f32 %v92, %v93
    %s95 = vtos %v94
    %v96 = vsel %vm85, %v84, 0.0
    %97 = vadd.xlane.f32.xlu0 %v96
    %v98 = vpop.xlane.xlu0 %97
    %v99 = vrot.slane %v98, 4
    %v100 = vadd.f32 %v98, %v99
    %v101 = vrot.slane %v100, 2
    %v102 = vadd.f32 %v100, %v101
    %v103 = vrot.slane %v102, 1
    %v104 = vadd.f32 %v102, %v103
    %s105 = vtos %v104
    %v106 = vlaneseq
    %v107 = vshrl.u32 %v106, 7
    %v108 = vlaneseq
    %v109 = vand.u32 %v108, 127
    %vm110 = vcmp.eq.s32.totalorder %v107, 0
    %vm111 = vcmp.eq.s32.totalorder %v109, 0
    %vm112 = vmand %vm110, %vm111
    %vm113 = vcmp.eq.s32.totalorder %v107, 1
    %vm114 = vmand %vm113, %vm111
    %v115 = vstv %s105
    %v116 = vsel %vm114, %v115, 0.0
    %v117 = vstv %s95
    %v118 = vsel %vm112, %v117, %v116
    %119 = vst [vmem:[#allocation7] sm:$0xff] %v118
    // Predicated region
    $region18: #{tpu_custom_call.1} parent=1 // pred_check
      _
    $region19: #{tpu_custom_call.1} parent=1 // pred_check_branch
      %121 = sbr.rel (0) target = $region21
    $region20: #{tpu_custom_call.1} parent=1 // pred_region
      %s123 = ssub.s32 128, 128
      %124 = vsyncadd [#allocation4], %s123
      %s126 = sshll.u32 [#allocation7], 4
      %s127 = int_to_ptr.vmem [resolvable:$true] %s126
      %129 = dma.vmem_to_hbm [thread:$0]  %s127, 128, %s2, [#allocation4]
    $region21: #{tpu_custom_call.1} parent=1 // pred_fallthru
      _
    // Predicated region
    $region22: #{tpu_custom_call.1} parent=1 // pred_check
      _
    $region23: #{tpu_custom_call.1} parent=1 // pred_check_branch
      %131 = sbr.rel (0) target = $region25
    $region24: #{tpu_custom_call.1} parent=1 // pred_region
      %132 = dma.done [#allocation4], 128
    $region25: #{tpu_custom_call.1} parent=1 // pred_fallthru
      _
    %133 = vsyncpa [#allocation3], 1
    %134 = vsyncpa [#allocation6], 1
    %135 = vsyncpa [#allocation4], 1

</llo_original>
